<compile_context>
chip_gen: v5e
topology: v5e:2x2
jax: 0.10.0
libtpu: 0.0.40
codegen_flags: <defaults>
</compile_context>

<pallas_src>
import jax
import jax.numpy as jnp
from jax.experimental import pallas as pl
from jax.experimental.pallas import tpu as pltpu


# Total VMEM budget for the double-buffered input blocks (all inputs, both
# pipeline buffers).  Kept under v5e's 16 MiB default scoped-VMEM limit.
_VMEM_INPUT_BUDGET = 12 * 1024 * 1024


def _choose_row_tile(n_rows, n_cols, itemsizes, max_tile_n=None):
    """Rows per block: as large as possible (multi-MiB blocks hide the
    ~0.35 us per-grid-step overhead) while <inputs> x <2 pipeline buffers>
    fits the VMEM budget on every chip generation."""
    bytes_per_row = max(sum(n_cols * s for s in itemsizes), 1)
    tile_n = _VMEM_INPUT_BUDGET // (2 * bytes_per_row)
    tile_n = max(32, (tile_n // 32) * 32)   # mult. of 32: legal for f32/bf16/int8
    if max_tile_n is not None:
        tile_n = min(tile_n, max(32, (max_tile_n // 32) * 32))
    if tile_n >= n_rows:
        return n_rows, 1                    # single full-height block
    return tile_n, pl.cdiv(n_rows, tile_n)


def _make_kernel(n_rows, tile_n, n_cols, with_bce):
    need_row_mask = (n_rows % tile_n) != 0

    def kernel(*refs):
        if with_bce:
            xh_ref, ph_ref, x_ref, m_ref, out_ref = refs
        else:
            xh_ref, x_ref, m_ref, out_ref = refs

        xh = xh_ref[...].astype(jnp.float32)
        x = x_ref[...].astype(jnp.float32)
        observed = m_ref[...].astype(jnp.int32) == 0   # True where NOT masked

        if need_row_mask:
            # The last row tile runs past n_rows; the out-of-bounds padding is
            # unspecified, so exclude it from every partial sum.
            rows = (pl.program_id(0) * tile_n
                    + jax.lax.broadcasted_iota(jnp.int32, (tile_n, n_cols), 0))
            valid = rows < n_rows
            observed_v = observed & valid
        else:
            valid = None
            observed_v = observed

        # --- masked MSE partials (nanmean numerator / denominator) ---
        diff = xh - x
        sse = jnp.sum(jnp.where(observed_v, diff * diff, 0.0))
        cnt = jnp.sum(observed_v.astype(jnp.float32))

        if with_bce:
            # BCE(sigmoid(ph), y), y = observed, with torch's -100 log clamp.
            ph = ph_ref[...].astype(jnp.float32)
            sp = jax.nn.softplus(ph)                      # one EUP chain
            y = observed.astype(jnp.float32)
            bce_elem = (y * jnp.minimum(sp - ph, 100.0)
                        + (1.0 - y) * jnp.minimum(sp, 100.0))
            if need_row_mask:
                bce_elem = jnp.where(valid, bce_elem, 0.0)
            bce = jnp.sum(bce_elem)
        else:
            bce = 0.0

        # Pack the per-block partial sums into one lane-dense (8, 128) slab:
        # sublane 0 -> sse, 1 -> cnt, 2 -> bce.  Per-block outputs (no carried
        # accumulator) keep the grid axis "parallel" (megacore on v7x); the
        # final reduction happens in plain JAX.
        sub = jax.lax.broadcasted_iota(jnp.int32, (8, 128), 0)
        slab = jnp.where(sub == 0, sse, jnp.where(sub == 1, cnt, bce))
        out_ref[0] = slab

    return kernel


def _run_partials(inputs, tile_n, num_tiles, n_rows, n_cols, with_bce):
    kernel = _make_kernel(n_rows, tile_n, n_cols, with_bce)
    in_specs = [pl.BlockSpec((tile_n, n_cols), lambda i: (i, 0))
                for _ in inputs]
    out_spec = pl.BlockSpec((1, 8, 128), lambda i: (i, 0, 0))
    return pl.pallas_call(
        kernel,
        out_shape=jax.ShapeDtypeStruct((num_tiles, 8, 128), jnp.float32),
        grid_spec=pltpu.PrefetchScalarGridSpec(
            num_scalar_prefetch=0,
            grid=(num_tiles,),
            in_specs=in_specs,
            out_specs=out_spec),
        compiler_params=pltpu.CompilerParams(
            dimension_semantics=("parallel",),
            vmem_limit_bytes=32 * 1024 * 1024),
    )(*inputs)


def mse_bce_loss(x_hat, x, mask, presence_absence=False, lambda_bce=1.0,
                 max_rows_per_block=None):
    """JAX/Pallas equivalent of MSEBCELoss.forward (detached=False).

    x_hat: (N, D) array, or a (recon, presence_logits) tuple when
           presence_absence=True.
    x:     (N, D) array.
    mask:  (N, D) bool array, True = masked / missing.
    Returns (loss, mse_loss, bce_loss) like the PyTorch module.
    """
    # TODO(synk): detached=True path (torch .detach().cpu().numpy()) is a
    # host-side transfer, not a kernel concern; omitted here.
    mask_i8 = mask.astype(jnp.int8)                 # 1 == masked / missing
    if presence_absence:
        recon, presence_hat = x_hat
        inputs = (recon, presence_hat, x, mask_i8)
    else:
        recon = x_hat
        inputs = (recon, x, mask_i8)

    n_rows, n_cols = recon.shape
    itemsizes = [jnp.dtype(a.dtype).itemsize for a in inputs]
    tile_n, num_tiles = _choose_row_tile(n_rows, n_cols, itemsizes,
                                         max_tile_n=max_rows_per_block)

    partials = _run_partials(inputs, tile_n, num_tiles, n_rows, n_cols,
                             with_bce=presence_absence)

    sse = jnp.sum(partials[:, 0, 0])
    cnt = jnp.sum(partials[:, 1, 0])
    mse_loss = sse / cnt
    if presence_absence:
        bce_sum = jnp.sum(partials[:, 2, 0])
        bce_loss = bce_sum / jnp.float32(n_rows * n_cols)
        loss = mse_loss + lambda_bce * bce_loss
        return loss, mse_loss, bce_loss
    return mse_loss, mse_loss, None


if __name__ == "__main__":
    key = jax.random.PRNGKey(0)
    k1, k2, k3, k4 = jax.random.split(key, 4)

    def ref_losses(recon, logits, x, mask):
        sq = (recon - x) ** 2
        ref_mse = jnp.sum(jnp.where(mask, 0.0, sq)) / jnp.sum(~mask)
        y = (~mask).astype(jnp.float32)
        p = jax.nn.sigmoid(logits)
        ref_bce = jnp.mean(-(y * jnp.maximum(jnp.log(p), -100.0)
                             + (1.0 - y) * jnp.maximum(jnp.log1p(-p), -100.0)))
        return ref_mse, ref_bce

    # Small shapes: N samples x D features.
    N, D = 8, 256
    x = jax.random.normal(k1, (N, D), dtype=jnp.float32)
    recon = x + 0.1 * jax.random.normal(k2, (N, D), dtype=jnp.float32)
    logits = jax.random.normal(k3, (N, D), dtype=jnp.float32)
    mask = jax.random.uniform(k4, (N, D)) < 0.2        # ~20% missing

    # presence_absence=True path (MSE + BCE kernel).
    loss, mse_l, bce_l = mse_bce_loss((recon, logits), x, mask,
                                      presence_absence=True, lambda_bce=1.0)
    jax.block_until_ready((loss, mse_l, bce_l))
    ref_mse, ref_bce = ref_losses(recon, logits, x, mask)
    assert jnp.allclose(mse_l, ref_mse, rtol=1e-5, atol=1e-5)
    assert jnp.allclose(bce_l, ref_bce, rtol=1e-5, atol=1e-5)
    assert jnp.allclose(loss, ref_mse + ref_bce, rtol=1e-5, atol=1e-5)

    # presence_absence=False path (no presence stream, no BCE math).
    loss2, mse_l2, bce_l2 = mse_bce_loss(recon, x, mask,
                                         presence_absence=False)
    jax.block_until_ready((loss2, mse_l2))
    assert bce_l2 is None
    assert jnp.allclose(loss2, ref_mse, rtol=1e-5, atol=1e-5)

    # Multi-tile path with a ragged tail (exercises row masking + parallel
    # per-block partial outputs).
    N2, D2 = 100, 256
    kk = jax.random.split(jax.random.PRNGKey(1), 4)
    x2 = jax.random.normal(kk[0], (N2, D2), dtype=jnp.float32)
    recon2 = x2 + 0.1 * jax.random.normal(kk[1], (N2, D2), dtype=jnp.float32)
    logits2 = jax.random.normal(kk[2], (N2, D2), dtype=jnp.float32)
    mask2 = jax.random.uniform(kk[3], (N2, D2)) < 0.3
    loss3, mse_l3, bce_l3 = mse_bce_loss((recon2, logits2), x2, mask2,
                                         presence_absence=True,
                                         max_rows_per_block=32)
    jax.block_until_ready((loss3, mse_l3, bce_l3))
    ref_mse2, ref_bce2 = ref_losses(recon2, logits2, x2, mask2)
    assert jnp.allclose(mse_l3, ref_mse2, rtol=1e-5, atol=1e-5)
    assert jnp.allclose(bce_l3, ref_bce2, rtol=1e-5, atol=1e-5)
    assert jnp.allclose(loss3, ref_mse2 + ref_bce2, rtol=1e-5, atol=1e-5)

    print("KERNEL_OK")
</pallas_src>

<mosaic_0001>
module attributes {stable_mosaic.version = 11 : i64} {
  func.func @kernel(%arg0: i32, %arg1: memref<8x256xf32, #tpu.memory_space<vmem>>, %arg2: memref<8x256xf32, #tpu.memory_space<vmem>>, %arg3: memref<8x256xf32, #tpu.memory_space<vmem>>, %arg4: memref<8x256xi8, #tpu.memory_space<vmem>>, %arg5: memref<1x8x128xf32, #tpu.memory_space<vmem>>) attributes {dimension_semantics = [#tpu.dimension_semantics<parallel>], iteration_bounds = array<i64: 1>, scalar_prefetch = 0 : i64, scratch_operands = 0 : i64, tpu.core_type = #tpu.core_type<tc>, window_params = [{transform_indices = @transform_0, window_bounds = array<i64: 8, 256>}, {transform_indices = @transform_1, window_bounds = array<i64: 8, 256>}, {transform_indices = @transform_2, window_bounds = array<i64: 8, 256>}, {transform_indices = @transform_3, window_bounds = array<i64: 8, 256>}, {transform_indices = @transform_4, window_bounds = array<i64: 1, 8, 128>}]} {
    %c0 = arith.constant 0 : index
    %c0_0 = arith.constant 0 : index
    %0 = vector.load %arg1[%c0, %c0_0] : memref<8x256xf32, #tpu.memory_space<vmem>>, vector<8x256xf32>
    %c0_1 = arith.constant 0 : index
    %c0_2 = arith.constant 0 : index
    %1 = vector.load %arg3[%c0_1, %c0_2] : memref<8x256xf32, #tpu.memory_space<vmem>>, vector<8x256xf32>
    %c0_3 = arith.constant 0 : index
    %c0_4 = arith.constant 0 : index
    %2 = vector.load %arg4[%c0_3, %c0_4] : memref<8x256xi8, #tpu.memory_space<vmem>>, vector<8x256xi8>
    %3 = arith.extsi %2 : vector<8x256xi8> to vector<8x256xi32>
    %c0_i32 = arith.constant 0 : i32
    %4 = vector.broadcast %c0_i32 : i32 to vector<8x256xi32>
    %5 = arith.cmpi eq, %3, %4 : vector<8x256xi32>
    %6 = arith.subf %0, %1 : vector<8x256xf32>
    %7 = arith.mulf %6, %6 : vector<8x256xf32>
    %cst = arith.constant 0.000000e+00 : f32
    %8 = vector.broadcast %cst : f32 to vector<8x256xf32>
    %9 = arith.select %5, %7, %8 : vector<8x256xi1>, vector<8x256xf32>
    %10 = vector.shape_cast %9 : vector<8x256xf32> to vector<1x8x256xf32>
    %cst_5 = arith.constant dense<0.000000e+00> : vector<1xf32>
    %11 = vector.multi_reduction <add>, %10, %cst_5 [1, 2] : vector<1x8x256xf32> to vector<1xf32>
    %12 = vector.shape_cast %11 : vector<1xf32> to vector<1x1x1xf32>
    %13 = vector.extract %12[0, 0, 0] : f32 from vector<1x1x1xf32>
    %14 = arith.extui %5 : vector<8x256xi1> to vector<8x256xi32>
    %15 = arith.sitofp %14 : vector<8x256xi32> to vector<8x256xf32>
    %16 = vector.shape_cast %15 : vector<8x256xf32> to vector<1x8x256xf32>
    %cst_6 = arith.constant dense<0.000000e+00> : vector<1xf32>
    %17 = vector.multi_reduction <add>, %16, %cst_6 [1, 2] : vector<1x8x256xf32> to vector<1xf32>
    %18 = vector.shape_cast %17 : vector<1xf32> to vector<1x1x1xf32>
    %19 = vector.extract %18[0, 0, 0] : f32 from vector<1x1x1xf32>
    %c0_7 = arith.constant 0 : index
    %c0_8 = arith.constant 0 : index
    %20 = vector.load %arg2[%c0_7, %c0_8] : memref<8x256xf32, #tpu.memory_space<vmem>>, vector<8x256xf32>
    %cst_9 = arith.constant 0.000000e+00 : f32
    %21 = vector.broadcast %cst_9 : f32 to vector<8x256xf32>
    %22 = arith.maximumf %20, %21 : vector<8x256xf32>
    %23 = vector.broadcast %cst_9 : f32 to vector<8x256xf32>
    %24 = arith.subf %20, %23 : vector<8x256xf32>
    %25 = arith.cmpf one, %24, %24 : vector<8x256xf32>
    %26 = vector.broadcast %cst_9 : f32 to vector<8x256xf32>
    %27 = arith.addf %20, %26 : vector<8x256xf32>
    %28 = math.absf %24 : vector<8x256xf32>
    %cst_10 = arith.constant 0.000000e+00 : f32
    %29 = vector.broadcast %cst_10 : f32 to vector<8x256xf32>
    %30 = arith.subf %29, %28 : vector<8x256xf32>
    %31 = math.exp %30 : vector<8x256xf32>
    %32 = math.log1p %31 : vector<8x256xf32>
    %33 = arith.addf %22, %32 : vector<8x256xf32>
    %34 = arith.select %25, %27, %33 : vector<8x256xi1>, vector<8x256xf32>
    %35 = arith.extui %5 : vector<8x256xi1> to vector<8x256xi32>
    %36 = arith.sitofp %35 : vector<8x256xi32> to vector<8x256xf32>
    %37 = arith.subf %34, %20 : vector<8x256xf32>
    %cst_11 = arith.constant 1.000000e+02 : f32
    %38 = vector.broadcast %cst_11 : f32 to vector<8x256xf32>
    %39 = arith.minimumf %37, %38 : vector<8x256xf32>
    %40 = arith.mulf %36, %39 : vector<8x256xf32>
    %cst_12 = arith.constant 1.000000e+00 : f32
    %41 = vector.broadcast %cst_12 : f32 to vector<8x256xf32>
    %42 = arith.subf %41, %36 : vector<8x256xf32>
    %cst_13 = arith.constant 1.000000e+02 : f32
    %43 = vector.broadcast %cst_13 : f32 to vector<8x256xf32>
    %44 = arith.minimumf %34, %43 : vector<8x256xf32>
    %45 = arith.mulf %42, %44 : vector<8x256xf32>
    %46 = arith.addf %40, %45 : vector<8x256xf32>
    %47 = vector.shape_cast %46 : vector<8x256xf32> to vector<1x8x256xf32>
    %cst_14 = arith.constant dense<0.000000e+00> : vector<1xf32>
    %48 = vector.multi_reduction <add>, %47, %cst_14 [1, 2] : vector<1x8x256xf32> to vector<1xf32>
    %49 = vector.shape_cast %48 : vector<1xf32> to vector<1x1x1xf32>
    %50 = vector.extract %49[0, 0, 0] : f32 from vector<1x1x1xf32>
    %51 = tpu.iota {dimensions = array<i32: 0>} : vector<8x128xi32>
    %c0_i32_15 = arith.constant 0 : i32
    %52 = vector.broadcast %c0_i32_15 : i32 to vector<8x128xi32>
    %53 = arith.cmpi eq, %51, %52 : vector<8x128xi32>
    %c1_i32 = arith.constant 1 : i32
    %54 = vector.broadcast %c1_i32 : i32 to vector<8x128xi32>
    %55 = arith.cmpi eq, %51, %54 : vector<8x128xi32>
    %56 = vector.broadcast %19 : f32 to vector<8x128xf32>
    %57 = vector.broadcast %50 : f32 to vector<8x128xf32>
    %58 = arith.select %55, %56, %57 : vector<8x128xi1>, vector<8x128xf32>
    %59 = vector.broadcast %13 : f32 to vector<8x128xf32>
    %60 = arith.select %53, %59, %58 : vector<8x128xi1>, vector<8x128xf32>
    %c0_16 = arith.constant 0 : index
    %c0_17 = arith.constant 0 : index
    %c0_18 = arith.constant 0 : index
    %61 = vector.load %arg5[%c0_16, %c0_17, %c0_18] : memref<1x8x128xf32, #tpu.memory_space<vmem>>, vector<1x8x128xf32>
    %62 = vector.shape_cast %61 : vector<1x8x128xf32> to vector<8x128xf32>
    %63 = vector.shape_cast %60 : vector<8x128xf32> to vector<1x8x128xf32>
    tpu.vector_store %arg5[%c0_16, %c0_17, %c0_18], %63 {strides = array<i32>} : memref<1x8x128xf32, #tpu.memory_space<vmem>>, vector<1x8x128xf32>,
    return
  }
  func.func @transform_0(%arg0: i32) -> (i32, i32) {
    %c0_i32 = arith.constant 0 : i32
    %c0_i32_0 = arith.constant 0 : i32
    return %arg0, %c0_i32 : i32, i32
  }
  func.func @transform_1(%arg0: i32) -> (i32, i32) {
    %c0_i32 = arith.constant 0 : i32
    %c0_i32_0 = arith.constant 0 : i32
    return %arg0, %c0_i32 : i32, i32
  }
  func.func @transform_2(%arg0: i32) -> (i32, i32) {
    %c0_i32 = arith.constant 0 : i32
    %c0_i32_0 = arith.constant 0 : i32
    return %arg0, %c0_i32 : i32, i32
  }
  func.func @transform_3(%arg0: i32) -> (i32, i32) {
    %c0_i32 = arith.constant 0 : i32
    %c0_i32_0 = arith.constant 0 : i32
    return %arg0, %c0_i32 : i32, i32
  }
  func.func @transform_4(%arg0: i32) -> (i32, i32, i32) {
    %c0_i32 = arith.constant 0 : i32
    %c0_i32_0 = arith.constant 0 : i32
    %c0_i32_1 = arith.constant 0 : i32
    return %arg0, %c0_i32, %c0_i32_0 : i32, i32, i32
  }
}

</mosaic_0001>

<llo_original>
// kernel: tpu_custom_call.1
$region0: #{tpu_custom_call.1}
  #allocation0 [shape = 'u32[]', space=smem, size = 0x4, offset = 0x4, fixed_abs, tag = 'smem constant byte address 0x4 - core index']
  #allocation1 [shape = 'u32[72,128]{1,0:T(1,128)}', space=vmem, size = 0x9000, scoped, tag = 'internal scratch']
  %s0 = inlined_call_operand.hbm [shape: f32[8,256], index: 0, kind: input, shape index: {}]
  %s1 = inlined_call_operand.hbm [shape: f32[8,256], index: 1, kind: input, shape index: {}]
  %s2 = inlined_call_operand.hbm [shape: f32[8,256], index: 2, kind: input, shape index: {}]
  %s3 = inlined_call_operand.hbm [shape: s8[8,256], index: 3, kind: input, shape index: {}]
  %s4 = inlined_call_operand.hbm [shape: f32[1,8,128], index: 4, kind: output, shape index: {}]
  %s5 = sld [smem:[#allocation0]]
  $region42: #{tpu_custom_call.1} parent=0
    _
  %s7 = ssub.s32 1, %s5
  %s8 = scalar_select 0, %s7, %s5
  $region1: #{tpu_custom_call.1} parent=0
    #allocation2 [shape = 'u8[8192]{0}', space=vmem, size = 0x2000, scoped, tag = 'input window, operand 0, single buffered']
    #allocation3 [shape = 's32[1]{0}', space=sflag, size = 0x4, scoped, tag = 'scoped memory for tpu_custom_call.1']
    #allocation4 [shape = 's32[1]{0}', space=sflag, size = 0x4, scoped, tag = 'scoped memory for tpu_custom_call.1']
    #allocation5 [shape = 'u8[8192]{0}', space=vmem, size = 0x2000, scoped, tag = 'input window, operand 1, single buffered']
    #allocation6 [shape = 's32[1]{0}', space=sflag, size = 0x4, scoped, tag = 'scoped memory for tpu_custom_call.1']
    #allocation7 [shape = 'u8[8192]{0}', space=vmem, size = 0x2000, scoped, tag = 'input window, operand 2, single buffered']
    #allocation8 [shape = 'u8[2048]{0}', space=vmem, size = 0x800, scoped, tag = 'input window, operand 3, single buffered']
    #allocation9 [shape = 's32[1]{0}', space=sflag, size = 0x4, scoped, tag = 'scoped memory for tpu_custom_call.1']
    #allocation10 [shape = 'u8[4096]{0}', space=vmem, size = 0x1000, scoped, tag = 'output window, operand 0, single buffered']
    %9 = vsyncpa [#allocation3], 0
    %10 = vsyncpa [#allocation6], 0
    %11 = vsyncpa [#allocation9], 0
    %12 = vsyncpa [#allocation4], 0
    // Predicated region
    $region2: #{tpu_custom_call.1} parent=1 // pred_check
      _
    $region3: #{tpu_custom_call.1} parent=1 // pred_check_branch
      %14 = sbr.rel (0) target = $region5
    $region4: #{tpu_custom_call.1} parent=1 // pred_region
      %16 = vsyncadd [#allocation3], 0
      %s18 = sshll.u32 %s0, 4
      %s19 = int_to_ptr.hbm [resolvable:$true] %s18
      %s20 = sshll.u32 [#allocation2], 4
      %s21 = int_to_ptr.vmem [resolvable:$true] %s20
      %23 = dma.hbm_to_vmem [thread:$0]  %s19, 256, %s21, [#allocation3]
    $region5: #{tpu_custom_call.1} parent=1 // pred_fallthru
      _
    // Predicated region
    $region6: #{tpu_custom_call.1} parent=1 // pred_check
      _
    $region7: #{tpu_custom_call.1} parent=1 // pred_check_branch
      %25 = sbr.rel (0) target = $region9
    $region8: #{tpu_custom_call.1} parent=1 // pred_region
      %27 = vsyncadd [#allocation6], 0
      %s29 = sshll.u32 %s1, 4
      %s30 = int_to_ptr.hbm [resolvable:$true] %s29
      %s31 = sshll.u32 [#allocation5], 4
      %s32 = int_to_ptr.vmem [resolvable:$true] %s31
      %34 = dma.hbm_to_vmem [thread:$0]  %s30, 256, %s32, [#allocation6]
    $region9: #{tpu_custom_call.1} parent=1 // pred_fallthru
      _
    // Predicated region
    $region10: #{tpu_custom_call.1} parent=1 // pred_check
      _
    $region11: #{tpu_custom_call.1} parent=1 // pred_check_branch
      %36 = sbr.rel (0) target = $region13
    $region12: #{tpu_custom_call.1} parent=1 // pred_region
      %38 = vsyncadd [#allocation6], 0
      %s40 = sshll.u32 %s2, 4
      %s41 = int_to_ptr.hbm [resolvable:$true] %s40
      %s42 = sshll.u32 [#allocation7], 4
      %s43 = int_to_ptr.vmem [resolvable:$true] %s42
      %45 = dma.hbm_to_vmem [thread:$0]  %s41, 256, %s43, [#allocation6]
    $region13: #{tpu_custom_call.1} parent=1 // pred_fallthru
      _
    // Predicated region
    $region14: #{tpu_custom_call.1} parent=1 // pred_check
      _
    $region15: #{tpu_custom_call.1} parent=1 // pred_check_branch
      %47 = sbr.rel (0) target = $region17
    $region16: #{tpu_custom_call.1} parent=1 // pred_region
      %49 = vsyncadd [#allocation9], 0
      %s51 = sshll.u32 %s3, 4
      %s52 = int_to_ptr.hbm [resolvable:$true] %s51
      %s53 = sshll.u32 [#allocation8], 4
      %s54 = int_to_ptr.vmem [resolvable:$true] %s53
      %56 = dma.hbm_to_vmem [thread:$0]  %s52, 64, %s54, [#allocation9]
    $region17: #{tpu_custom_call.1} parent=1 // pred_fallthru
      _
    // Predicated region
    $region18: #{tpu_custom_call.1} parent=1 // pred_check
      _
    $region19: #{tpu_custom_call.1} parent=1 // pred_check_branch
      %58 = sbr.rel (0) target = $region21
    $region20: #{tpu_custom_call.1} parent=1 // pred_region
      %60 = dma.done [#allocation3], 256
    $region21: #{tpu_custom_call.1} parent=1 // pred_fallthru
      _
    // Predicated region
    $region22: #{tpu_custom_call.1} parent=1 // pred_check
      _
    $region23: #{tpu_custom_call.1} parent=1 // pred_check_branch
      %62 = sbr.rel (0) target = $region25
    $region24: #{tpu_custom_call.1} parent=1 // pred_region
      %64 = dma.done [#allocation6], 256
    $region25: #{tpu_custom_call.1} parent=1 // pred_fallthru
      _
    // Predicated region
    $region26: #{tpu_custom_call.1} parent=1 // pred_check
      _
    $region27: #{tpu_custom_call.1} parent=1 // pred_check_branch
      %66 = sbr.rel (0) target = $region29
    $region28: #{tpu_custom_call.1} parent=1 // pred_region
      %68 = dma.done [#allocation6], 256
    $region29: #{tpu_custom_call.1} parent=1 // pred_fallthru
      _
    // Predicated region
    $region30: #{tpu_custom_call.1} parent=1 // pred_check
      _
    $region31: #{tpu_custom_call.1} parent=1 // pred_check_branch
      %70 = sbr.rel (0) target = $region33
    $region32: #{tpu_custom_call.1} parent=1 // pred_region
      %72 = dma.done [#allocation9], 64
    $region33: #{tpu_custom_call.1} parent=1 // pred_fallthru
      _
    %v73 = vld [vmem:[#allocation2] sm:$0xff]
    %v74 = vld [vmem:[#allocation2 + $0x8] sm:$0xff]
    %v75 = vld [vmem:[#allocation7] sm:$0xff]
    %v76 = vld [vmem:[#allocation7 + $0x8] sm:$0xff]
    %v77 = vld [vmem:[#allocation8] sm:$0xf]
    %v78 = vunpack.c.0.s8 %v77
    %v79 = vunpack.c.1.s8 %v77
    %vm80 = vcmp.eq.s32.totalorder %v78, 0
    %vm81 = vcmp.eq.s32.totalorder %v79, 0
    %v82 = vsub.f32 %v73, %v75
    %v83 = vsub.f32 %v74, %v76
    %v84 = vmul.f32 %v82, %v82
    %v85 = vmul.f32 %v83, %v83
    %v86 = vsel %vm80, %v84, 0.0
    %v87 = vsel %vm81, %v85, 0.0
    %v88 = vadd.f32 %v86, %v87
    %89 = vadd.xlane.f32.xlu0 %v88
    %v90 = vpop.xlane.xlu0 %89
    %v91 = vrot.slane %v90, 4
    %v92 = vadd.f32 %v90, %v91
    %v93 = vrot.slane %v92, 2
    %v94 = vadd.f32 %v92, %v93
    %v95 = vrot.slane %v94, 1
    %v96 = vadd.f32 %v94, %v95
    %s97 = vtos %v96
    %v98 = vsel %vm80, 1, 0
    %v99 = vsel %vm81, 1, 0
    %v100 = vcvt.s32.f32 %v98
    %v101 = vcvt.s32.f32 %v99
    %v102 = vadd.f32 %v100, %v101
    %103 = vadd.xlane.f32.xlu0 %v102
    %v104 = vpop.xlane.xlu0 %103
    %v105 = vrot.slane %v104, 4
    %v106 = vadd.f32 %v104, %v105
    %v107 = vrot.slane %v106, 2
    %v108 = vadd.f32 %v106, %v107
    %v109 = vrot.slane %v108, 1
    %v110 = vadd.f32 %v108, %v109
    %s111 = vtos %v110
    %v112 = vld [vmem:[#allocation5] sm:$0xff]
    %v113 = vld [vmem:[#allocation5 + $0x8] sm:$0xff]
    %v114 = vmax.f32 %v112, 0.0
    %v115 = vmax.f32 %v113, 0.0
    %vm116 = vcmp.ne.f32.partialorder %v112, %v112
    %vm117 = vcmp.ne.f32.partialorder %v113, %v113
    %v118 = vadd.f32 %v112, 0.0
    %v119 = vadd.f32 %v113, 0.0
    %v120 = vand.u32 2147483647, %v112
    %v121 = vand.u32 2147483647, %v113
    %v122 = vsub.f32 0.0, %v120
    %v123 = vsub.f32 0.0, %v121
    %v124 = vmul.f32 %v122, 1.442695
    %v125 = vpow.pop %v124
    %v126 = vmul.f32 %v123, 1.442695
    %v127 = vpow.pop %v126
    %v128 = vadd.f32 %v125, 1.0
    %v129 = vlog2.pop %v128
    %v130 = vmul.f32 %v129, 0.6931472
    %v131 = vmul.f32 -0.5, %v125
    %v132 = vadd.f32 %v131, 1.0
    %v133 = vmul.f32 %v132, %v125
    %v134 = vand.u32 2147483647, %v125
    %vm135 = vcmp.lt.f32.partialorder %v134, 0.0004427343
    %v136 = vsel %vm135, %v133, %v130
    %v137 = vadd.f32 %v127, 1.0
    %v138 = vlog2.pop %v137
    %v139 = vmul.f32 %v138, 0.6931472
    %v140 = vmul.f32 -0.5, %v127
    %v141 = vadd.f32 %v140, 1.0
    %v142 = vmul.f32 %v141, %v127
    %v143 = vand.u32 2147483647, %v127
    %vm144 = vcmp.lt.f32.partialorder %v143, 0.0004427343
    %v145 = vsel %vm144, %v142, %v139
    %v146 = vadd.f32 %v114, %v136
    %v147 = vadd.f32 %v115, %v145
    %v148 = vsel %vm116, %v118, %v146
    %v149 = vsel %vm117, %v119, %v147
    %v150 = vsub.f32 %v148, %v112
    %v151 = vsub.f32 %v149, %v113
    %v152 = vmin.f32 %v150, 100.0
    %v153 = vmin.f32 %v151, 100.0
    %v154 = vmul.f32 %v100, %v152
    %v155 = vmul.f32 %v101, %v153
    %v156 = vsub.f32 1.0, %v100
    %v157 = vsub.f32 1.0, %v101
    %v158 = vmin.f32 %v148, 100.0
    %v159 = vmin.f32 %v149, 100.0
    %v160 = vmul.f32 %v156, %v158
    %v161 = vmul.f32 %v157, %v159
    %v162 = vadd.f32 %v154, %v160
    %v163 = vadd.f32 %v155, %v161
    %v164 = vadd.f32 %v162, %v163
    %165 = vadd.xlane.f32.xlu0 %v164
    %v166 = vpop.xlane.xlu0 %165
    %v167 = vrot.slane %v166, 4
    %v168 = vadd.f32 %v166, %v167
    %v169 = vrot.slane %v168, 2
    %v170 = vadd.f32 %v168, %v169
    %v171 = vrot.slane %v170, 1
    %v172 = vadd.f32 %v170, %v171
    %s173 = vtos %v172
    %v174 = vlaneseq
    %v175 = vshrl.u32 %v174, 7
    %vm176 = vcmp.eq.s32.totalorder %v175, 0
    %vm177 = vcmp.eq.s32.totalorder %v175, 1
    %v178 = vstv %s111
    %v179 = vstv %s173
    %v180 = vsel %vm177, %v178, %v179
    %v181 = vstv %s97
    %v182 = vsel %vm176, %v181, %v180
    %183 = vst [vmem:[#allocation10] sm:$0xff] %v182
    // Predicated region
    $region34: #{tpu_custom_call.1} parent=1 // pred_check
      _
    $region35: #{tpu_custom_call.1} parent=1 // pred_check_branch
      %185 = sbr.rel (0) target = $region37
    $region36: #{tpu_custom_call.1} parent=1 // pred_region
      %187 = vsyncadd [#allocation4], 0
      %s189 = sshll.u32 [#allocation10], 4
      %s190 = int_to_ptr.vmem [resolvable:$true] %s189
      %s191 = sshll.u32 %s4, 4
      %s192 = int_to_ptr.hbm [resolvable:$true] %s191
      %194 = dma.vmem_to_hbm [thread:$0]  %s190, 128, %s192, [#allocation4]
    $region37: #{tpu_custom_call.1} parent=1 // pred_fallthru
      _
    // Predicated region
    $region38: #{tpu_custom_call.1} parent=1 // pred_check
      _
    $region39: #{tpu_custom_call.1} parent=1 // pred_check_branch
      %196 = sbr.rel (0) target = $region41
    $region40: #{tpu_custom_call.1} parent=1 // pred_region
      %198 = dma.done [#allocation4], 128
    $region41: #{tpu_custom_call.1} parent=1 // pred_fallthru
      _
    %199 = vsyncpa [#allocation3], 1
    %200 = vsyncpa [#allocation6], 1
    %201 = vsyncpa [#allocation9], 1
    %202 = vsyncpa [#allocation4], 1

</llo_original>
